<compile_context>
chip_gen: v7x
topology: tpu7x:2x2x1
jax: 0.10.0
libtpu: 0.0.40
codegen_flags: <defaults>
</compile_context>

<pallas_src>
import functools
import math

import jax
import jax.numpy as jnp
from jax.experimental import pallas as pl
from jax.experimental.pallas import tpu as pltpu


# ----------------------------------------------------------------------------
# Kernel
# ----------------------------------------------------------------------------
def _drop_path_kernel(scale_ref, x_ref, o_ref):
    """scale_ref: (B, 1) f32 per-sample scale.  x_ref/o_ref: (B, TM) tile."""
    x = x_ref[...].astype(jnp.float32)
    o_ref[...] = (x * scale_ref[...]).astype(o_ref.dtype)


# ----------------------------------------------------------------------------
# Wrapper
# ----------------------------------------------------------------------------
_TARGET_BLOCK_BYTES = 2 * 1024 * 1024  # per block; ~4 live buffers => ~8 MiB VMEM


def _pick_block_m(M, B, itemsize):
    """Largest multiple of 128 that divides M and fits the VMEM budget."""
    if M % 128 != 0:
        return M                                   # full-extent block (small inputs)
    units = M // 128
    cap_units = _TARGET_BLOCK_BYTES // (max(B, 1) * itemsize * 128)
    cap_units = max(1, min(units, cap_units))
    d = cap_units
    while units % d != 0:
        d -= 1
    return d * 128


def drop_path(x, drop_prob=0.0, training=False, scale_by_keep=True, key=None,
              seed=0, block_m=None):
    """DropPath forward. x: (B, ...) of any rank >= 1."""
    if drop_prob == 0.0 or not training:
        return x                                   # identity path, like PyTorch

    keep_prob = 1.0 - float(drop_prob)
    inv_scale = (1.0 / keep_prob) if (scale_by_keep and keep_prob > 0.0) else 1.0

    B = x.shape[0]
    M = math.prod(x.shape[1:]) if x.ndim > 1 else 1
    if M == 0:
        return x
    x2 = x.reshape(B, M)

    # Per-sample Bernoulli(keep_prob) mask, scaled.  Only B scalars -> wrapper
    # side cost is negligible; the kernel does the heavy (B, M) multiply.
    if key is None:
        key = jax.random.PRNGKey(seed)
    keep = jax.random.bernoulli(key, p=keep_prob, shape=(B, 1))
    scale = keep.astype(jnp.float32) * jnp.float32(inv_scale)      # (B, 1)

    # Lane-dense tiling: blocks are (B, block_m) with block_m a multiple of 128
    # that evenly divides M (unmasked stores, no partial tiles).
    if block_m is None:
        block_m = _pick_block_m(M, B, x.dtype.itemsize)
    grid_m = pl.cdiv(M, block_m)

    out2 = pl.pallas_call(
        _drop_path_kernel,
        out_shape=jax.ShapeDtypeStruct((B, M), x.dtype),
        grid=(grid_m,),
        in_specs=[
            pl.BlockSpec((B, 1), lambda i: (0, 0)),        # per-sample scale, resident
            pl.BlockSpec((B, block_m), lambda i: (0, i)),  # x tile
        ],
        out_specs=pl.BlockSpec((B, block_m), lambda i: (0, i)),
        compiler_params=pltpu.CompilerParams(
            dimension_semantics=("parallel",),
            vmem_limit_bytes=32 * 1024 * 1024,
        ),
    )(scale, x2)
    return out2.reshape(x.shape)


class DropPath:
    """Stateless mirror of the PyTorch DropPath module."""

    def __init__(self, drop_prob=0.0, scale_by_keep=True):
        self.drop_prob = 0.0 if drop_prob is None else float(drop_prob)
        self.scale_by_keep = scale_by_keep
        self.training = True

    def __call__(self, x, *, key=None, seed=0):
        return drop_path(x, drop_prob=self.drop_prob, training=self.training,
                         scale_by_keep=self.scale_by_keep, key=key, seed=seed)


# ----------------------------------------------------------------------------
# Demo / self-check
# ----------------------------------------------------------------------------
if __name__ == "__main__":
    key = jax.random.PRNGKey(0)

    # Test 1: small NCHW-style tensor, single tile.
    B, C, H, W = 2, 4, 16, 16
    x = jax.random.normal(key, (B, C, H, W), jnp.float32)
    drop_prob = 0.25
    keep_prob = 1.0 - drop_prob

    fn = jax.jit(functools.partial(drop_path, drop_prob=drop_prob, training=True,
                                   scale_by_keep=True, seed=1234))
    out = jax.block_until_ready(fn(x))
    assert out.shape == x.shape
    assert bool(jnp.all(jnp.isfinite(out)))
    for b in range(B):
        kept = bool(jnp.allclose(out[b], x[b] * (1.0 / keep_prob), atol=1e-5, rtol=1e-5))
        dropped = bool(jnp.allclose(out[b], 0.0))
        assert kept or dropped, "per-sample mask/scale mismatch"

    # Test 2: multi-tile pipelined path (grid > 1) — per-sample decision must be
    # identical across every tile of a sample.
    x2 = jax.random.normal(jax.random.PRNGKey(1), (2, 8, 32, 64), jnp.float32)  # M = 16384
    fn2 = jax.jit(functools.partial(drop_path, drop_prob=0.5, training=True,
                                    scale_by_keep=True, seed=7, block_m=512))   # 32 tiles
    out2 = jax.block_until_ready(fn2(x2))
    for b in range(x2.shape[0]):
        kept = bool(jnp.allclose(out2[b], x2[b] * 2.0, atol=1e-5, rtol=1e-5))
        dropped = bool(jnp.allclose(out2[b], 0.0))
        assert kept or dropped, "per-sample consistency across tiles failed"

    # Test 3: eval mode / p=0 is the identity (no kernel launched), like PyTorch.
    out_eval = drop_path(x, drop_prob=drop_prob, training=False)
    assert bool(jnp.array_equal(out_eval, x))
    out_p0 = drop_path(x, drop_prob=0.0, training=True)
    assert bool(jnp.array_equal(out_p0, x))

    # Test 4: statistical sanity — scale_by_keep keeps the expectation ~unbiased.
    xb = jnp.ones((64, 8, 16), jnp.float32)
    outs = drop_path(xb, drop_prob=0.3, training=True, scale_by_keep=True, seed=42)
    mean = float(jnp.mean(outs))
    assert 0.5 < mean < 1.5, f"unexpected mean {mean}"

    print("KERNEL_OK")
</pallas_src>

<mosaic_0001>
module attributes {stable_mosaic.version = 11 : i64} {
  func.func @_drop_path_kernel(%arg0: i32, %arg1: memref<2x1xf32, #tpu.memory_space<vmem>>, %arg2: memref<2x1024xf32, #tpu.memory_space<vmem>>, %arg3: memref<2x1024xf32, #tpu.memory_space<vmem>>) attributes {dimension_semantics = [#tpu.dimension_semantics<parallel>], iteration_bounds = array<i64: 1>, scalar_prefetch = 0 : i64, scratch_operands = 0 : i64, tpu.core_type = #tpu.core_type<tc>, window_params = [{pipeline_mode = #tpu.pipeline_mode<synchronous>, transform_indices = @transform_0, window_bounds = array<i64: 2, 1>}, {transform_indices = @transform_1, window_bounds = array<i64: 2, 1024>}, {transform_indices = @transform_2, window_bounds = array<i64: 2, 1024>}]} {
    %c0 = arith.constant 0 : index
    %c0_0 = arith.constant 0 : index
    %0 = vector.load %arg2[%c0, %c0_0] : memref<2x1024xf32, #tpu.memory_space<vmem>>, vector<2x1024xf32>
    %c0_1 = arith.constant 0 : index
    %c0_2 = arith.constant 0 : index
    %1 = vector.load %arg1[%c0_1, %c0_2] : memref<2x1xf32, #tpu.memory_space<vmem>>, vector<2x1xf32>
    %2 = vector.broadcast %1 : vector<2x1xf32> to vector<2x1024xf32>
    %3 = arith.mulf %0, %2 : vector<2x1024xf32>
    %c0_3 = arith.constant 0 : index
    %c0_4 = arith.constant 0 : index
    %4 = vector.load %arg3[%c0_3, %c0_4] : memref<2x1024xf32, #tpu.memory_space<vmem>>, vector<2x1024xf32>
    tpu.vector_store %arg3[%c0_3, %c0_4], %3 {strides = array<i32>} : memref<2x1024xf32, #tpu.memory_space<vmem>>, vector<2x1024xf32>,
    return
  }
  func.func @transform_0(%arg0: i32) -> (i32, i32) {
    %c0_i32 = arith.constant 0 : i32
    %c0_i32_0 = arith.constant 0 : i32
    %c0_i32_1 = arith.constant 0 : i32
    return %c0_i32, %c0_i32_0 : i32, i32
  }
  func.func @transform_1(%arg0: i32) -> (i32, i32) {
    %c0_i32 = arith.constant 0 : i32
    %c0_i32_0 = arith.constant 0 : i32
    return %c0_i32, %arg0 : i32, i32
  }
  func.func @transform_2(%arg0: i32) -> (i32, i32) {
    %c0_i32 = arith.constant 0 : i32
    %c0_i32_0 = arith.constant 0 : i32
    return %c0_i32, %arg0 : i32, i32
  }
}

</mosaic_0001>

<llo_original>
// kernel: drop_path.1
$region0: #{drop_path.1}
  #allocation0 [shape = 'u32[]', space=smem, size = 0x4, offset = 0x4, fixed_abs, tag = 'smem constant byte address 0x4 - core index']
  #allocation1 [shape = 'u32[144,128]{1,0:T(1,128)}', space=vmem, size = 0x12000, scoped, tag = 'internal scratch']
  %s0 = inlined_call_operand.vmem [shape: f32[2,1], index: 0, kind: input, shape index: {}]
  %s1 = inlined_call_operand.vmem [shape: f32[2,1024], index: 1, kind: input, shape index: {}]
  %s2 = inlined_call_operand.vmem [shape: f32[2,1024], index: 2, kind: output, shape index: {}]
  %s3 = sld [smem:[#allocation0]]
  $region18: #{drop_path.1} parent=0
    _
  %s5 = ssub.s32 1, %s3
  %s6 = scalar_select 0, %s5, %s3
  // Predicated region
  $region2: #{drop_path.1} parent=0 // pred_check
    _
  $region3: #{drop_path.1} parent=0 // pred_check_branch
    %8 = sbr.rel (0) target = $region5
  $region4: #{drop_path.1} parent=0 // pred_region
    _
  $region5: #{drop_path.1} parent=0 // pred_fallthru
    _
  // Predicated region
  $region6: #{drop_path.1} parent=0 // pred_check
    _
  $region7: #{drop_path.1} parent=0 // pred_check_branch
    %10 = sbr.rel (0) target = $region9
  $region8: #{drop_path.1} parent=0 // pred_region
    _
  $region9: #{drop_path.1} parent=0 // pred_fallthru
    _
  %v11 = vld [vmem:[%s1] sm:$0xff]
  %v12 = vld [vmem:[%s1 + $0x8] sm:$0xff]
  %v13 = vld [vmem:[%s0] sm:$0x3]
  %15 = vset.pattern.permute.xlu0 0
  %16 = vperm.xlu0 %15, %v13
  %v17 = vpop.permute.xlu0 %16
  %v19 = vunpack.c.l.s4 269488144
  %v20 = vunpack.c.0.s8 %v19
  %v21 = vlaneseq
  %v22 = vshrl.u32 %v21, 7
  %v23 = vsub.s32 %v20, %v22
  %v24 = vrot.slane %v17, %v23
  %v26 = vmul.f32 %v11, %v24
  %v27 = vmul.f32 %v12, %v24
  %28 = vst [vmem:[%s2] sm:$0xff] %v26
  %29 = vst [vmem:[%s2 + $0x8] sm:$0xff] %v27
  // Predicated region
  $region10: #{drop_path.1} parent=0 // pred_check
    _
  $region11: #{drop_path.1} parent=0 // pred_check_branch
    %31 = sbr.rel (0) target = $region13
  $region12: #{drop_path.1} parent=0 // pred_region
    _
  $region13: #{drop_path.1} parent=0 // pred_fallthru
    _
  // Predicated region
  $region14: #{drop_path.1} parent=0 // pred_check
    _
  $region15: #{drop_path.1} parent=0 // pred_check_branch
    %33 = sbr.rel (0) target = $region17
  $region16: #{drop_path.1} parent=0 // pred_region
    _
  $region17: #{drop_path.1} parent=0 // pred_fallthru
    _

</llo_original>
